<compile_context>
chip_gen: v5e
topology: v5e:2x2
jax: 0.10.0
libtpu: 0.0.40
codegen_flags: <defaults>
</compile_context>

<pallas_src>
import jax
import jax.numpy as jnp
import numpy as np
from jax.experimental import pallas as pl
from jax.experimental.pallas import tpu as pltpu


def make_layer_kernel(N, H, W, C_in, C_mid, C_out):
    """One invocation processes the whole batch as (N*C, H*W) slabs."""
    HW = H * W
    R_in = N * C_in

    def kernel(x_ref, w1_ref, s1_ref, sh1_ref, w2_ref, sh2_ref, o_ref):
        # ---------- BN1 (folded scale/shift, tiled over batch) + ReLU ----------
        y = jnp.maximum(x_ref[...] * s1_ref[...] + sh1_ref[...], 0.0)  # (R_in, HW)

        # ---------- border masks, hoisted out of the tap loop ----------
        # Each sublane row is one (image, channel) pair, so a lane-axis roll
        # never mixes images/channels; only in-row (spatial) wrap must be masked.
        p = jax.lax.broadcasted_iota(jnp.int32, (R_in, HW), 1)
        if (W & (W - 1)) == 0:
            col = jnp.bitwise_and(p, W - 1)
        else:
            col = p % W   # TODO(synk): non-power-of-2 W takes the integer-mod path
        ok = {
            (-1, 0): p >= W,          # neighbour row h-1 exists
            (1, 0): p < HW - W,       # neighbour row h+1 exists
            (0, -1): col >= 1,        # neighbour col w-1 exists
            (0, 1): col <= W - 2,     # neighbour col w+1 exists
        }

        # ---------- 3x3 conv: register-resident im2col (roll + select),
        #            9 accumulated MXU matmuls, no VMEM staging buffer ----------
        mid = None
        for k in range(9):                      # static unroll
            dy, dx = k // 3 - 1, k % 3 - 1
            off = dy * W + dx                   # flat spatial offset of this tap
            if off == 0:
                slab = y
            else:
                # slab[p] = y[p + off] for in-bounds neighbours, 0 otherwise
                slab = pltpu.roll(y, (-off) % HW, axis=1)   # XLU lane rotate
                m = None
                if dy != 0:
                    m = ok[(dy, 0)]
                if dx != 0:
                    mx = ok[(0, dx)]
                    m = mx if m is None else jnp.logical_and(m, mx)
                slab = jnp.where(m, slab, 0.0)
            # (N*C_mid, N*C_in) x (N*C_in, HW) block-diagonal tap matmul
            d = jnp.dot(w1_ref[k], slab, preferred_element_type=jnp.float32)
            mid = d if mid is None else mid + d               # (N*C_mid, HW)

        # ---------- BN2 (scale folded into w1) + ReLU ----------
        z = jnp.maximum(mid + sh2_ref[...], 0.0)

        # ---------- 1x1 conv: (N*C_out, N*C_mid) x (N*C_mid, HW) ----------
        out = jnp.dot(w2_ref[...], z, preferred_element_type=jnp.float32)

        # F.dropout with training=False is the identity.
        # TODO(synk): training-mode stochastic dropout would need pltpu.prng_* here.
        o_ref[...] = out                                      # (N*C_out, HW) lane-dense store

    return kernel


def upsample_dense_layer(x_nchw, w1_torch, w2_torch,
                         g1, b1, m1, v1, g2, b2, m2, v2, eps=1e-5):
    """Pallas implementation of UpsampleDenseLayer.forward (inference mode).

    x_nchw:   (N, C_in, H, W)      float32
    w1_torch: (C_mid, C_in, 3, 3)  conv1 weight (PyTorch OIHW)
    w2_torch: (C_out, C_mid, 1, 1) conv2 weight (PyTorch OIHW)
    g*, b*, m*, v*: BatchNorm gamma/beta/running_mean/running_var
    returns:  (N, C_out, H, W)
    """
    N, C_in, H, W = x_nchw.shape
    C_mid = w1_torch.shape[0]
    C_out = w2_torch.shape[0]
    HW = H * W
    R_in, R_mid, R_out = N * C_in, N * C_mid, N * C_out
    f32 = jnp.float32

    # NCHW -> (N*C_in, H*W): free reshape; each sublane row = one (image, channel).
    x_flat = x_nchw.reshape(R_in, HW).astype(f32)

    # BN1 folded into per-(image,channel) scale/shift, shaped (R_in, 1) so it
    # broadcasts along the lane (spatial) axis inside the kernel.
    s1 = (g1 / jnp.sqrt(v1 + eps)).astype(f32)
    sh1 = (b1 - m1 * s1).astype(f32)
    s1_full = jnp.tile(s1, N).reshape(R_in, 1)
    sh1_full = jnp.tile(sh1, N).reshape(R_in, 1)

    # BN2: scale folded into conv1 weight (below); additive shift stays in-kernel.
    s2 = (g2 / jnp.sqrt(v2 + eps)).astype(f32)
    sh2 = (b2 - m2 * s2).astype(f32)
    sh2_full = jnp.tile(sh2, N).reshape(R_mid, 1)

    eye_n = jnp.eye(N, dtype=f32)

    # conv1 OIHW -> 9 per-tap, block-diagonal-over-batch matrices with the BN2
    # scale folded in:
    #   w1_blk[k, n*C_mid+o, m*C_in+i] = (n == m) * s2[o] * w1[o, i, ky, kx],
    # with k = ky*3 + kx matching the in-kernel (dy, dx) tap order.
    w1_scaled = w1_torch.astype(f32) * s2[:, None, None, None]            # (C_mid, C_in, 3, 3)
    w1_taps = jnp.transpose(w1_scaled, (2, 3, 0, 1)).reshape(9, C_mid, C_in)
    w1_blk = jnp.einsum('nm,koi->knomi', eye_n, w1_taps).reshape(9, R_mid, R_in)

    # conv2 OI11 -> block-diagonal-over-batch (N*C_out, N*C_mid)
    w2_mat = w2_torch[:, :, 0, 0].astype(f32)
    w2_blk = jnp.einsum('nm,oc->nomc', eye_n, w2_mat).reshape(R_out, R_mid)

    kernel = make_layer_kernel(N, H, W, C_in, C_mid, C_out)

    # Single invocation (no grid): all operands are small whole-array VMEM
    # blocks; the im2col lives in registers, so no scratch buffers are needed.
    out_flat = pl.pallas_call(
        kernel,
        out_shape=jax.ShapeDtypeStruct((R_out, HW), jnp.float32),
    )(x_flat, w1_blk, s1_full, sh1_full, w2_blk, sh2_full)

    # (N*C_out, H*W) -> NCHW (a free reshape).
    return out_flat.reshape(N, C_out, H, W)


def reference_jax(x_nchw, w1_torch, w2_torch,
                  g1, b1, m1, v1, g2, b2, m2, v2, eps=1e-5):
    """Pure-JAX reference (lax conv) for correctness checking."""
    x = jnp.transpose(x_nchw, (0, 2, 3, 1)).astype(jnp.float32)
    s1 = g1 / jnp.sqrt(v1 + eps)
    sh1 = b1 - m1 * s1
    s2 = g2 / jnp.sqrt(v2 + eps)
    sh2 = b2 - m2 * s2

    y = jnp.maximum(x * s1 + sh1, 0.0)
    w1_hwio = jnp.transpose(w1_torch, (2, 3, 1, 0))
    y = jax.lax.conv_general_dilated(
        y, w1_hwio, window_strides=(1, 1), padding=((1, 1), (1, 1)),
        dimension_numbers=("NHWC", "HWIO", "NHWC"))
    z = jnp.maximum(y * s2 + sh2, 0.0)
    w2_io = jnp.transpose(w2_torch[:, :, 0, 0], (1, 0))
    out = jnp.einsum("nhwc,co->nhwo", z, w2_io)
    return jnp.transpose(out, (0, 3, 1, 2))


if __name__ == "__main__":
    # Module hyper-parameters (small, consistent with the PyTorch __init__):
    input_features = 4
    shrink_rate = 2
    bn_size = 4
    drop_rate = 0.0           # dropout is identity in inference mode anyway
    C_in = input_features
    C_mid = bn_size * shrink_rate              # 8
    C_out = input_features - shrink_rate       # 2
    N, H, W = 2, 16, 16

    key = jax.random.PRNGKey(0)
    ks = jax.random.split(key, 11)
    x = jax.random.normal(ks[0], (N, C_in, H, W), dtype=jnp.float32)

    # conv weights (deterministic synthetic init, PyTorch OIHW shapes)
    w1 = jax.random.normal(ks[1], (C_mid, C_in, 3, 3), jnp.float32) * 0.1
    w2 = jax.random.normal(ks[2], (C_out, C_mid, 1, 1), jnp.float32) * 0.1

    # BatchNorm params / running stats (deterministic, non-trivial)
    g1 = 1.0 + 0.1 * jax.random.normal(ks[3], (C_in,), jnp.float32)
    b1 = 0.1 * jax.random.normal(ks[4], (C_in,), jnp.float32)
    m1 = 0.1 * jax.random.normal(ks[5], (C_in,), jnp.float32)
    v1 = jax.random.uniform(ks[6], (C_in,), jnp.float32, 0.5, 1.5)
    g2 = 1.0 + 0.1 * jax.random.normal(ks[7], (C_mid,), jnp.float32)
    b2 = 0.1 * jax.random.normal(ks[8], (C_mid,), jnp.float32)
    m2 = 0.1 * jax.random.normal(ks[9], (C_mid,), jnp.float32)
    v2 = jax.random.uniform(ks[10], (C_mid,), jnp.float32, 0.5, 1.5)

    out = upsample_dense_layer(x, w1, w2, g1, b1, m1, v1, g2, b2, m2, v2)
    out = jax.block_until_ready(out)

    ref = jax.block_until_ready(
        reference_jax(x, w1, w2, g1, b1, m1, v1, g2, b2, m2, v2))

    np.testing.assert_allclose(np.asarray(out), np.asarray(ref),
                               rtol=1e-5, atol=1e-5)
    assert out.shape == (N, C_out, H, W)
    print("KERNEL_OK")
</pallas_src>

<mosaic_0001>
module attributes {stable_mosaic.version = 11 : i64} {
  func.func @kernel(%arg0: memref<8x256xf32, #tpu.memory_space<vmem>>, %arg1: memref<9x16x8xf32, #tpu.memory_space<vmem>>, %arg2: memref<8x1xf32, #tpu.memory_space<vmem>>, %arg3: memref<8x1xf32, #tpu.memory_space<vmem>>, %arg4: memref<4x16xf32, #tpu.memory_space<vmem>>, %arg5: memref<16x1xf32, #tpu.memory_space<vmem>>, %arg6: memref<4x256xf32, #tpu.memory_space<vmem>>) attributes {dimension_semantics = [], scalar_prefetch = 0 : i64, scratch_operands = 0 : i64, tpu.core_type = #tpu.core_type<tc>} {
    %c0 = arith.constant 0 : index
    %c0_0 = arith.constant 0 : index
    %0 = vector.load %arg0[%c0, %c0_0] : memref<8x256xf32, #tpu.memory_space<vmem>>, vector<8x256xf32>
    %c0_1 = arith.constant 0 : index
    %c0_2 = arith.constant 0 : index
    %1 = vector.load %arg2[%c0_1, %c0_2] : memref<8x1xf32, #tpu.memory_space<vmem>>, vector<8x1xf32>
    %2 = vector.broadcast %1 : vector<8x1xf32> to vector<8x256xf32>
    %3 = arith.mulf %0, %2 : vector<8x256xf32>
    %c0_3 = arith.constant 0 : index
    %c0_4 = arith.constant 0 : index
    %4 = vector.load %arg3[%c0_3, %c0_4] : memref<8x1xf32, #tpu.memory_space<vmem>>, vector<8x1xf32>
    %5 = vector.broadcast %4 : vector<8x1xf32> to vector<8x256xf32>
    %6 = arith.addf %3, %5 : vector<8x256xf32>
    %cst = arith.constant 0.000000e+00 : f32
    %7 = vector.broadcast %cst : f32 to vector<8x256xf32>
    %8 = arith.maximumf %6, %7 : vector<8x256xf32>
    %9 = tpu.iota {dimensions = array<i32: 1>} : vector<8x256xi32>
    %c15_i32 = arith.constant 15 : i32
    %10 = vector.broadcast %c15_i32 : i32 to vector<8x256xi32>
    %11 = arith.andi %9, %10 : vector<8x256xi32>
    %c16_i32 = arith.constant 16 : i32
    %12 = vector.broadcast %c16_i32 : i32 to vector<8x256xi32>
    %13 = arith.cmpi sge, %9, %12 : vector<8x256xi32>
    %c240_i32 = arith.constant 240 : i32
    %14 = vector.broadcast %c240_i32 : i32 to vector<8x256xi32>
    %15 = arith.cmpi slt, %9, %14 : vector<8x256xi32>
    %c1_i32 = arith.constant 1 : i32
    %16 = vector.broadcast %c1_i32 : i32 to vector<8x256xi32>
    %17 = arith.cmpi sge, %11, %16 : vector<8x256xi32>
    %c14_i32 = arith.constant 14 : i32
    %18 = vector.broadcast %c14_i32 : i32 to vector<8x256xi32>
    %19 = arith.cmpi sle, %11, %18 : vector<8x256xi32>
    %c17_i32 = arith.constant 17 : i32
    %20 = tpu.dynamic_rotate %8 by %c17_i32 dim 1 : vector<8x256xf32>, i32 -> vector<8x256xf32>
    %21 = arith.andi %13, %17 : vector<8x256xi1>
    %cst_5 = arith.constant 0.000000e+00 : f32
    %22 = vector.broadcast %cst_5 : f32 to vector<8x256xf32>
    %23 = arith.select %21, %20, %22 : vector<8x256xi1>, vector<8x256xf32>
    %c0_6 = arith.constant 0 : index
    %c0_7 = arith.constant 0 : index
    %c0_8 = arith.constant 0 : index
    %24 = vector.load %arg1[%c0_6, %c0_7, %c0_8] : memref<9x16x8xf32, #tpu.memory_space<vmem>>, vector<1x16x8xf32>
    %25 = vector.shape_cast %24 : vector<1x16x8xf32> to vector<16x8xf32>
    %cst_9 = arith.constant dense<0.000000e+00> : vector<16x256xf32>
    %26 = tpu.matmul %25, %23, %cst_9 {dimension_numbers = #tpu.dot_dimension_numbers<[1], [0], [0], [1], [0, 0, 1, 1], [], []>} : vector<16x8xf32>, vector<8x256xf32>, vector<16x256xf32> -> vector<16x256xf32>
    %c16_i32_10 = arith.constant 16 : i32
    %27 = tpu.dynamic_rotate %8 by %c16_i32_10 dim 1 : vector<8x256xf32>, i32 -> vector<8x256xf32>
    %cst_11 = arith.constant 0.000000e+00 : f32
    %28 = vector.broadcast %cst_11 : f32 to vector<8x256xf32>
    %29 = arith.select %13, %27, %28 : vector<8x256xi1>, vector<8x256xf32>
    %c1 = arith.constant 1 : index
    %c0_12 = arith.constant 0 : index
    %c0_13 = arith.constant 0 : index
    %30 = vector.load %arg1[%c1, %c0_12, %c0_13] : memref<9x16x8xf32, #tpu.memory_space<vmem>>, vector<1x16x8xf32>
    %31 = vector.shape_cast %30 : vector<1x16x8xf32> to vector<16x8xf32>
    %cst_14 = arith.constant dense<0.000000e+00> : vector<16x256xf32>
    %32 = tpu.matmul %31, %29, %cst_14 {dimension_numbers = #tpu.dot_dimension_numbers<[1], [0], [0], [1], [0, 0, 1, 1], [], []>} : vector<16x8xf32>, vector<8x256xf32>, vector<16x256xf32> -> vector<16x256xf32>
    %33 = arith.addf %26, %32 : vector<16x256xf32>
    %c15_i32_15 = arith.constant 15 : i32
    %34 = tpu.dynamic_rotate %8 by %c15_i32_15 dim 1 : vector<8x256xf32>, i32 -> vector<8x256xf32>
    %35 = arith.andi %13, %19 : vector<8x256xi1>
    %cst_16 = arith.constant 0.000000e+00 : f32
    %36 = vector.broadcast %cst_16 : f32 to vector<8x256xf32>
    %37 = arith.select %35, %34, %36 : vector<8x256xi1>, vector<8x256xf32>
    %c2 = arith.constant 2 : index
    %c0_17 = arith.constant 0 : index
    %c0_18 = arith.constant 0 : index
    %38 = vector.load %arg1[%c2, %c0_17, %c0_18] : memref<9x16x8xf32, #tpu.memory_space<vmem>>, vector<1x16x8xf32>
    %39 = vector.shape_cast %38 : vector<1x16x8xf32> to vector<16x8xf32>
    %cst_19 = arith.constant dense<0.000000e+00> : vector<16x256xf32>
    %40 = tpu.matmul %39, %37, %cst_19 {dimension_numbers = #tpu.dot_dimension_numbers<[1], [0], [0], [1], [0, 0, 1, 1], [], []>} : vector<16x8xf32>, vector<8x256xf32>, vector<16x256xf32> -> vector<16x256xf32>
    %41 = arith.addf %33, %40 : vector<16x256xf32>
    %c1_i32_20 = arith.constant 1 : i32
    %42 = tpu.dynamic_rotate %8 by %c1_i32_20 dim 1 : vector<8x256xf32>, i32 -> vector<8x256xf32>
    %cst_21 = arith.constant 0.000000e+00 : f32
    %43 = vector.broadcast %cst_21 : f32 to vector<8x256xf32>
    %44 = arith.select %17, %42, %43 : vector<8x256xi1>, vector<8x256xf32>
    %c3 = arith.constant 3 : index
    %c0_22 = arith.constant 0 : index
    %c0_23 = arith.constant 0 : index
    %45 = vector.load %arg1[%c3, %c0_22, %c0_23] : memref<9x16x8xf32, #tpu.memory_space<vmem>>, vector<1x16x8xf32>
    %46 = vector.shape_cast %45 : vector<1x16x8xf32> to vector<16x8xf32>
    %cst_24 = arith.constant dense<0.000000e+00> : vector<16x256xf32>
    %47 = tpu.matmul %46, %44, %cst_24 {dimension_numbers = #tpu.dot_dimension_numbers<[1], [0], [0], [1], [0, 0, 1, 1], [], []>} : vector<16x8xf32>, vector<8x256xf32>, vector<16x256xf32> -> vector<16x256xf32>
    %48 = arith.addf %41, %47 : vector<16x256xf32>
    %c4 = arith.constant 4 : index
    %c0_25 = arith.constant 0 : index
    %c0_26 = arith.constant 0 : index
    %49 = vector.load %arg1[%c4, %c0_25, %c0_26] : memref<9x16x8xf32, #tpu.memory_space<vmem>>, vector<1x16x8xf32>
    %50 = vector.shape_cast %49 : vector<1x16x8xf32> to vector<16x8xf32>
    %cst_27 = arith.constant dense<0.000000e+00> : vector<16x256xf32>
    %51 = tpu.matmul %50, %8, %cst_27 {dimension_numbers = #tpu.dot_dimension_numbers<[1], [0], [0], [1], [0, 0, 1, 1], [], []>} : vector<16x8xf32>, vector<8x256xf32>, vector<16x256xf32> -> vector<16x256xf32>
    %52 = arith.addf %48, %51 : vector<16x256xf32>
    %c255_i32 = arith.constant 255 : i32
    %53 = tpu.dynamic_rotate %8 by %c255_i32 dim 1 : vector<8x256xf32>, i32 -> vector<8x256xf32>
    %cst_28 = arith.constant 0.000000e+00 : f32
    %54 = vector.broadcast %cst_28 : f32 to vector<8x256xf32>
    %55 = arith.select %19, %53, %54 : vector<8x256xi1>, vector<8x256xf32>
    %c5 = arith.constant 5 : index
    %c0_29 = arith.constant 0 : index
    %c0_30 = arith.constant 0 : index
    %56 = vector.load %arg1[%c5, %c0_29, %c0_30] : memref<9x16x8xf32, #tpu.memory_space<vmem>>, vector<1x16x8xf32>
    %57 = vector.shape_cast %56 : vector<1x16x8xf32> to vector<16x8xf32>
    %cst_31 = arith.constant dense<0.000000e+00> : vector<16x256xf32>
    %58 = tpu.matmul %57, %55, %cst_31 {dimension_numbers = #tpu.dot_dimension_numbers<[1], [0], [0], [1], [0, 0, 1, 1], [], []>} : vector<16x8xf32>, vector<8x256xf32>, vector<16x256xf32> -> vector<16x256xf32>
    %59 = arith.addf %52, %58 : vector<16x256xf32>
    %c241_i32 = arith.constant 241 : i32
    %60 = tpu.dynamic_rotate %8 by %c241_i32 dim 1 : vector<8x256xf32>, i32 -> vector<8x256xf32>
    %61 = arith.andi %15, %17 : vector<8x256xi1>
    %cst_32 = arith.constant 0.000000e+00 : f32
    %62 = vector.broadcast %cst_32 : f32 to vector<8x256xf32>
    %63 = arith.select %61, %60, %62 : vector<8x256xi1>, vector<8x256xf32>
    %c6 = arith.constant 6 : index
    %c0_33 = arith.constant 0 : index
    %c0_34 = arith.constant 0 : index
    %64 = vector.load %arg1[%c6, %c0_33, %c0_34] : memref<9x16x8xf32, #tpu.memory_space<vmem>>, vector<1x16x8xf32>
    %65 = vector.shape_cast %64 : vector<1x16x8xf32> to vector<16x8xf32>
    %cst_35 = arith.constant dense<0.000000e+00> : vector<16x256xf32>
    %66 = tpu.matmul %65, %63, %cst_35 {dimension_numbers = #tpu.dot_dimension_numbers<[1], [0], [0], [1], [0, 0, 1, 1], [], []>} : vector<16x8xf32>, vector<8x256xf32>, vector<16x256xf32> -> vector<16x256xf32>
    %67 = arith.addf %59, %66 : vector<16x256xf32>
    %c240_i32_36 = arith.constant 240 : i32
    %68 = tpu.dynamic_rotate %8 by %c240_i32_36 dim 1 : vector<8x256xf32>, i32 -> vector<8x256xf32>
    %cst_37 = arith.constant 0.000000e+00 : f32
    %69 = vector.broadcast %cst_37 : f32 to vector<8x256xf32>
    %70 = arith.select %15, %68, %69 : vector<8x256xi1>, vector<8x256xf32>
    %c7 = arith.constant 7 : index
    %c0_38 = arith.constant 0 : index
    %c0_39 = arith.constant 0 : index
    %71 = vector.load %arg1[%c7, %c0_38, %c0_39] : memref<9x16x8xf32, #tpu.memory_space<vmem>>, vector<1x16x8xf32>
    %72 = vector.shape_cast %71 : vector<1x16x8xf32> to vector<16x8xf32>
    %cst_40 = arith.constant dense<0.000000e+00> : vector<16x256xf32>
    %73 = tpu.matmul %72, %70, %cst_40 {dimension_numbers = #tpu.dot_dimension_numbers<[1], [0], [0], [1], [0, 0, 1, 1], [], []>} : vector<16x8xf32>, vector<8x256xf32>, vector<16x256xf32> -> vector<16x256xf32>
    %74 = arith.addf %67, %73 : vector<16x256xf32>
    %c239_i32 = arith.constant 239 : i32
    %75 = tpu.dynamic_rotate %8 by %c239_i32 dim 1 : vector<8x256xf32>, i32 -> vector<8x256xf32>
    %76 = arith.andi %15, %19 : vector<8x256xi1>
    %cst_41 = arith.constant 0.000000e+00 : f32
    %77 = vector.broadcast %cst_41 : f32 to vector<8x256xf32>
    %78 = arith.select %76, %75, %77 : vector<8x256xi1>, vector<8x256xf32>
    %c8 = arith.constant 8 : index
    %c0_42 = arith.constant 0 : index
    %c0_43 = arith.constant 0 : index
    %79 = vector.load %arg1[%c8, %c0_42, %c0_43] : memref<9x16x8xf32, #tpu.memory_space<vmem>>, vector<1x16x8xf32>
    %80 = vector.shape_cast %79 : vector<1x16x8xf32> to vector<16x8xf32>
    %cst_44 = arith.constant dense<0.000000e+00> : vector<16x256xf32>
    %81 = tpu.matmul %80, %78, %cst_44 {dimension_numbers = #tpu.dot_dimension_numbers<[1], [0], [0], [1], [0, 0, 1, 1], [], []>} : vector<16x8xf32>, vector<8x256xf32>, vector<16x256xf32> -> vector<16x256xf32>
    %82 = arith.addf %74, %81 : vector<16x256xf32>
    %c0_45 = arith.constant 0 : index
    %c0_46 = arith.constant 0 : index
    %83 = vector.load %arg5[%c0_45, %c0_46] : memref<16x1xf32, #tpu.memory_space<vmem>>, vector<16x1xf32>
    %84 = vector.broadcast %83 : vector<16x1xf32> to vector<16x256xf32>
    %85 = arith.addf %82, %84 : vector<16x256xf32>
    %cst_47 = arith.constant 0.000000e+00 : f32
    %86 = vector.broadcast %cst_47 : f32 to vector<16x256xf32>
    %87 = arith.maximumf %85, %86 : vector<16x256xf32>
    %c0_48 = arith.constant 0 : index
    %c0_49 = arith.constant 0 : index
    %88 = vector.load %arg4[%c0_48, %c0_49] : memref<4x16xf32, #tpu.memory_space<vmem>>, vector<4x16xf32>
    %cst_50 = arith.constant dense<0.000000e+00> : vector<4x256xf32>
    %89 = tpu.matmul %88, %87, %cst_50 {dimension_numbers = #tpu.dot_dimension_numbers<[1], [0], [0], [1], [0, 0, 1, 1], [], []>} : vector<4x16xf32>, vector<16x256xf32>, vector<4x256xf32> -> vector<4x256xf32>
    %c0_51 = arith.constant 0 : index
    %c0_52 = arith.constant 0 : index
    %90 = vector.load %arg6[%c0_51, %c0_52] : memref<4x256xf32, #tpu.memory_space<vmem>>, vector<4x256xf32>
    tpu.vector_store %arg6[%c0_51, %c0_52], %89 {strides = array<i32>} : memref<4x256xf32, #tpu.memory_space<vmem>>, vector<4x256xf32>,
    return
  }
}

</mosaic_0001>

<llo_original>
// kernel: tpu_custom_call.1
$region0: #{tpu_custom_call.1}
  #allocation0 [shape = 'u32[]', space=smem, size = 0x4, offset = 0x4, fixed_abs, tag = 'smem constant byte address 0x4 - core index']
  #allocation1 [shape = 'u32[72,128]{1,0:T(1,128)}', space=vmem, size = 0x9000, scoped, tag = 'internal scratch']
  %s0 = inlined_call_operand.vmem [shape: f32[8,256], index: 0, kind: input, shape index: {}]
  %s1 = inlined_call_operand.vmem [shape: f32[9,16,8], index: 1, kind: input, shape index: {}]
  %s2 = inlined_call_operand.vmem [shape: f32[8,1], index: 2, kind: input, shape index: {}]
  %s3 = inlined_call_operand.vmem [shape: f32[8,1], index: 3, kind: input, shape index: {}]
  %s4 = inlined_call_operand.vmem [shape: f32[4,16], index: 4, kind: input, shape index: {}]
  %s5 = inlined_call_operand.vmem [shape: f32[16,1], index: 5, kind: input, shape index: {}]
  %s6 = inlined_call_operand.hbm [shape: f32[4,256], index: 6, kind: output, shape index: {}]
  %s7 = sld [smem:[#allocation0]]
  $region34: #{tpu_custom_call.1} parent=0
    _
  %s9 = ssub.s32 1, %s7
  %s10 = scalar_select 0, %s9, %s7
  $region1: #{tpu_custom_call.1} parent=0
    #allocation2 [shape = 'u8[4096]{0}', space=vmem, size = 0x1000, scoped, tag = 'output window, operand 0, single buffered']
    #allocation3 [shape = 's32[1]{0}', space=sflag, size = 0x4, scoped, tag = 'scoped memory for tpu_custom_call.1']
    %11 = vsyncpa [#allocation3], 0
    // Predicated region
    $region2: #{tpu_custom_call.1} parent=1 // pred_check
      _
    $region3: #{tpu_custom_call.1} parent=1 // pred_check_branch
      %13 = sbr.rel (0) target = $region5
    $region4: #{tpu_custom_call.1} parent=1 // pred_region
      _
    $region5: #{tpu_custom_call.1} parent=1 // pred_fallthru
      _
    // Predicated region
    $region6: #{tpu_custom_call.1} parent=1 // pred_check
      _
    $region7: #{tpu_custom_call.1} parent=1 // pred_check_branch
      %15 = sbr.rel (0) target = $region9
    $region8: #{tpu_custom_call.1} parent=1 // pred_region
      _
    $region9: #{tpu_custom_call.1} parent=1 // pred_fallthru
      _
    // Predicated region
    $region10: #{tpu_custom_call.1} parent=1 // pred_check
      _
    $region11: #{tpu_custom_call.1} parent=1 // pred_check_branch
      %17 = sbr.rel (0) target = $region13
    $region12: #{tpu_custom_call.1} parent=1 // pred_region
      _
    $region13: #{tpu_custom_call.1} parent=1 // pred_fallthru
      _
    // Predicated region
    $region14: #{tpu_custom_call.1} parent=1 // pred_check
      _
    $region15: #{tpu_custom_call.1} parent=1 // pred_check_branch
      %19 = sbr.rel (0) target = $region17
    $region16: #{tpu_custom_call.1} parent=1 // pred_region
      _
    $region17: #{tpu_custom_call.1} parent=1 // pred_fallthru
      _
    // Predicated region
    $region18: #{tpu_custom_call.1} parent=1 // pred_check
      _
    $region19: #{tpu_custom_call.1} parent=1 // pred_check_branch
      %21 = sbr.rel (0) target = $region21
    $region20: #{tpu_custom_call.1} parent=1 // pred_region
      _
    $region21: #{tpu_custom_call.1} parent=1 // pred_fallthru
      _
    // Predicated region
    $region22: #{tpu_custom_call.1} parent=1 // pred_check
      _
    $region23: #{tpu_custom_call.1} parent=1 // pred_check_branch
      %23 = sbr.rel (0) target = $region25
    $region24: #{tpu_custom_call.1} parent=1 // pred_region
      _
    $region25: #{tpu_custom_call.1} parent=1 // pred_fallthru
      _
    %v24 = vld [vmem:[%s0] sm:$0xff]
    %v25 = vld [vmem:[%s0 + $0x8] sm:$0xff]
    %v26 = vld [vmem:[%s2] sm:$0xff]
    %28 = vset.pattern.permute.xlu0 0
    %29 = vperm.xlu0 %28, %v26
    %v30 = vpop.permute.xlu0 %29
    %v32 = vmul.f32 %v24, %v30
    %v33 = vmul.f32 %v25, %v30
    %v34 = vld [vmem:[%s3] sm:$0xff]
    %36 = vset.pattern.permute.xlu0 0
    %37 = vperm.xlu0 %36, %v34
    %v38 = vpop.permute.xlu0 %37
    %v40 = vadd.f32 %v32, %v38
    %v41 = vadd.f32 %v33, %v38
    %v42 = vmax.f32 %v40, 0.0
    %v43 = vmax.f32 %v41, 0.0
    %v44 = vlaneseq
    %v45 = vand.u32 %v44, 127
    %v46 = vadd.s32 %v45, 128
    %v47 = vand.u32 %v45, 15
    %v48 = vand.u32 %v46, 15
    %vm49 = vcmp.ge.s32.totalorder %v45, 16
    %vm50 = vcmp.ge.s32.totalorder %v46, 16
    %vm51 = vcmp.lt.s32.totalorder %v45, 240
    %vm52 = vcmp.lt.s32.totalorder %v46, 240
    %vm53 = vcmp.ge.s32.totalorder %v47, 1
    %vm54 = vcmp.ge.s32.totalorder %v48, 1
    %vm55 = vcmp.le.s32.totalorder %v47, 14
    %vm56 = vcmp.le.s32.totalorder %v48, 14
    %57 = vrot.lane.b32.xlu0 %v42, 17
    %v58 = vpop.permute.xlu0 %57
    %59 = vrot.lane.b32.xlu0 %v43, 17
    %v60 = vpop.permute.xlu0 %59
    %vm61 = vcmp.lt.s32.totalorder %v45, 17
    %v62 = vsel %vm61, %v58, %v60
    %v63 = vsel %vm61, %v60, %v58
    %vm64 = vmand %vm49, %vm53
    %vm65 = vmand %vm50, %vm54
    %v66 = vsel %vm64, %v63, 0.0
    %v67 = vsel %vm65, %v62, 0.0
    %v68 = vld [vmem:[%s1] sm:$0xff]
    %v69 = vld [vmem:[%s1 + $0x8] sm:$0xff]
    %70 = vrot.lane.b32.xlu0 %v42, 16
    %v71 = vpop.permute.xlu0 %70
    %72 = vrot.lane.b32.xlu0 %v43, 16
    %v73 = vpop.permute.xlu0 %72
    %vm74 = vcmp.lt.s32.totalorder %v45, 16
    %v75 = vsel %vm74, %v71, %v73
    %v76 = vsel %vm74, %v73, %v71
    %v77 = vsel %vm49, %v76, 0.0
    %v78 = vsel %vm50, %v75, 0.0
    %s79 = scalar_lea.vmem %s1, 16
    %v80 = vld [vmem:[%s79] sm:$0xff]
    %v81 = vld [vmem:[%s79 + $0x8] sm:$0xff]
    %vm82 = vcmask 64512
    %v84 = vsel %vm82, %v80, 0
    %v87 = vsel %vm82, %v81, 0
    %89 = vmatpush.msra.mxu0 0.0
    %90 = vmatpush.msra.mxu0 0.0
    %91 = vmatpush.msra.mxu0 0.0
    %92 = vmatpush.msra.mxu0 0.0
    %93 = vmatpush.msra.mxu0 0.0
    %94 = vmatpush.msra.mxu0 0.0
    %95 = vmatpush.msra.mxu0 0.0
    %96 = vmatpush.msra.mxu0 0.0
    %97 = vmatpush.msra.mxu0 0.0
    %98 = vmatpush.msra.mxu0 0.0
    %99 = vmatpush.msra.mxu0 0.0
    %100 = vmatpush.msra.mxu0 0.0
    %101 = vmatpush.msra.mxu0 0.0
    %102 = vmatpush.msra.mxu0 0.0
    %103 = vmatpush.msra.mxu0 0.0
    %104 = vmatpush.msra.mxu0 %v77
    %105 = vmatmul.f32.gmra.mxu0 %v84
    %v106 = vpop.f32.mrf.mxu0
    %v107 = vadd.f32 0.0, %v106
    %108 = vmatmul.f32.gmra.mxu0 %v87
    %v109 = vpop.f32.mrf.mxu0
    %v110 = vadd.f32 0.0, %v109
    %111 = vdwg.mxu0
    %112 = vmatpush.msra.mxu0 0.0
    %113 = vmatpush.msra.mxu0 0.0
    %114 = vmatpush.msra.mxu0 0.0
    %115 = vmatpush.msra.mxu0 0.0
    %116 = vmatpush.msra.mxu0 0.0
    %117 = vmatpush.msra.mxu0 0.0
    %118 = vmatpush.msra.mxu0 0.0
    %119 = vmatpush.msra.mxu0 0.0
    %120 = vmatpush.msra.mxu0 0.0
    %121 = vmatpush.msra.mxu0 0.0
    %122 = vmatpush.msra.mxu0 0.0
    %123 = vmatpush.msra.mxu0 0.0
    %124 = vmatpush.msra.mxu0 0.0
    %125 = vmatpush.msra.mxu0 0.0
    %126 = vmatpush.msra.mxu0 0.0
    %127 = vmatpush.msra.mxu0 %v78
    %128 = vmatmul.f32.gmra.mxu0 %v84
    %v129 = vpop.f32.mrf.mxu0
    %v130 = vadd.f32 0.0, %v129
    %131 = vmatmul.f32.gmra.mxu0 %v87
    %v132 = vpop.f32.mrf.mxu0
    %v133 = vadd.f32 0.0, %v132
    %134 = vdwg.mxu0
    %v136 = vsel %vm82, %v68, 0
    %v139 = vsel %vm82, %v69, 0
    %141 = vmatpush.msra.mxu0 0.0
    %142 = vmatpush.msra.mxu0 0.0
    %143 = vmatpush.msra.mxu0 0.0
    %144 = vmatpush.msra.mxu0 0.0
    %145 = vmatpush.msra.mxu0 0.0
    %146 = vmatpush.msra.mxu0 0.0
    %147 = vmatpush.msra.mxu0 0.0
    %148 = vmatpush.msra.mxu0 0.0
    %149 = vmatpush.msra.mxu0 0.0
    %150 = vmatpush.msra.mxu0 0.0
    %151 = vmatpush.msra.mxu0 0.0
    %152 = vmatpush.msra.mxu0 0.0
    %153 = vmatpush.msra.mxu0 0.0
    %154 = vmatpush.msra.mxu0 0.0
    %155 = vmatpush.msra.mxu0 0.0
    %156 = vmatpush.msra.mxu0 %v66
    %157 = vmatmul.f32.gmra.mxu0 %v136
    %v158 = vpop.f32.mrf.mxu0
    %v159 = vadd.f32 %v107, %v158
    %160 = vmatmul.f32.gmra.mxu0 %v139
    %v161 = vpop.f32.mrf.mxu0
    %v162 = vadd.f32 %v110, %v161
    %163 = vdwg.mxu0
    %164 = vmatpush.msra.mxu0 0.0
    %165 = vmatpush.msra.mxu0 0.0
    %166 = vmatpush.msra.mxu0 0.0
    %167 = vmatpush.msra.mxu0 0.0
    %168 = vmatpush.msra.mxu0 0.0
    %169 = vmatpush.msra.mxu0 0.0
    %170 = vmatpush.msra.mxu0 0.0
    %171 = vmatpush.msra.mxu0 0.0
    %172 = vmatpush.msra.mxu0 0.0
    %173 = vmatpush.msra.mxu0 0.0
    %174 = vmatpush.msra.mxu0 0.0
    %175 = vmatpush.msra.mxu0 0.0
    %176 = vmatpush.msra.mxu0 0.0
    %177 = vmatpush.msra.mxu0 0.0
    %178 = vmatpush.msra.mxu0 0.0
    %179 = vmatpush.msra.mxu0 %v67
    %180 = vmatmul.f32.gmra.mxu0 %v136
    %v181 = vpop.f32.mrf.mxu0
    %v182 = vadd.f32 %v130, %v181
    %183 = vmatmul.f32.gmra.mxu0 %v139
    %v184 = vpop.f32.mrf.mxu0
    %v185 = vadd.f32 %v133, %v184
    %186 = vdwg.mxu0
    %187 = vrot.lane.b32.xlu0 %v42, 15
    %v188 = vpop.permute.xlu0 %187
    %189 = vrot.lane.b32.xlu0 %v43, 15
    %v190 = vpop.permute.xlu0 %189
    %vm191 = vcmp.lt.s32.totalorder %v45, 15
    %v192 = vsel %vm191, %v188, %v190
    %v193 = vsel %vm191, %v190, %v188
    %vm194 = vmand %vm49, %vm55
    %vm195 = vmand %vm50, %vm56
    %v196 = vsel %vm194, %v193, 0.0
    %v197 = vsel %vm195, %v192, 0.0
    %s198 = scalar_lea.vmem %s1, 32
    %v199 = vld [vmem:[%s198] sm:$0xff]
    %v200 = vld [vmem:[%s198 + $0x8] sm:$0xff]
    %v202 = vsel %vm82, %v199, 0
    %v205 = vsel %vm82, %v200, 0
    %207 = vmatpush.msra.mxu0 0.0
    %208 = vmatpush.msra.mxu0 0.0
    %209 = vmatpush.msra.mxu0 0.0
    %210 = vmatpush.msra.mxu0 0.0
    %211 = vmatpush.msra.mxu0 0.0
    %212 = vmatpush.msra.mxu0 0.0
    %213 = vmatpush.msra.mxu0 0.0
    %214 = vmatpush.msra.mxu0 0.0
    %215 = vmatpush.msra.mxu0 0.0
    %216 = vmatpush.msra.mxu0 0.0
    %217 = vmatpush.msra.mxu0 0.0
    %218 = vmatpush.msra.mxu0 0.0
    %219 = vmatpush.msra.mxu0 0.0
    %220 = vmatpush.msra.mxu0 0.0
    %221 = vmatpush.msra.mxu0 0.0
    %222 = vmatpush.msra.mxu0 %v196
    %223 = vmatmul.f32.gmra.mxu0 %v202
    %v224 = vpop.f32.mrf.mxu0
    %v225 = vadd.f32 0.0, %v224
    %226 = vmatmul.f32.gmra.mxu0 %v205
    %v227 = vpop.f32.mrf.mxu0
    %v228 = vadd.f32 0.0, %v227
    %229 = vdwg.mxu0
    %230 = vmatpush.msra.mxu0 0.0
    %231 = vmatpush.msra.mxu0 0.0
    %232 = vmatpush.msra.mxu0 0.0
    %233 = vmatpush.msra.mxu0 0.0
    %234 = vmatpush.msra.mxu0 0.0
    %235 = vmatpush.msra.mxu0 0.0
    %236 = vmatpush.msra.mxu0 0.0
    %237 = vmatpush.msra.mxu0 0.0
    %238 = vmatpush.msra.mxu0 0.0
    %239 = vmatpush.msra.mxu0 0.0
    %240 = vmatpush.msra.mxu0 0.0
    %241 = vmatpush.msra.mxu0 0.0
    %242 = vmatpush.msra.mxu0 0.0
    %243 = vmatpush.msra.mxu0 0.0
    %244 = vmatpush.msra.mxu0 0.0
    %245 = vmatpush.msra.mxu0 %v197
    %246 = vmatmul.f32.gmra.mxu0 %v202
    %v247 = vpop.f32.mrf.mxu0
    %v248 = vadd.f32 0.0, %v247
    %249 = vmatmul.f32.gmra.mxu0 %v205
    %v250 = vpop.f32.mrf.mxu0
    %v251 = vadd.f32 0.0, %v250
    %252 = vdwg.mxu0
    %v253 = vadd.f32 %v159, %v225
    %v254 = vadd.f32 %v182, %v248
    %v255 = vadd.f32 %v162, %v228
    %v256 = vadd.f32 %v185, %v251
    %257 = vrot.lane.b32.xlu0 %v42, 1
    %v258 = vpop.permute.xlu0 %257
    %259 = vrot.lane.b32.xlu0 %v43, 1
    %v260 = vpop.permute.xlu0 %259
    %vm261 = vcmp.lt.s32.totalorder %v45, 1
    %v262 = vsel %vm261, %v258, %v260
    %v263 = vsel %vm261, %v260, %v258
    %v264 = vsel %vm53, %v263, 0.0
    %v265 = vsel %vm54, %v262, 0.0
    %s266 = scalar_lea.vmem %s1, 48
    %v267 = vld [vmem:[%s266] sm:$0xff]
    %v268 = vld [vmem:[%s266 + $0x8] sm:$0xff]
    %v270 = vsel %vm82, %v267, 0
    %v273 = vsel %vm82, %v268, 0
    %275 = vmatpush.msra.mxu0 0.0
    %276 = vmatpush.msra.mxu0 0.0
    %277 = vmatpush.msra.mxu0 0.0
    %278 = vmatpush.msra.mxu0 0.0
    %279 = vmatpush.msra.mxu0 0.0
    %280 = vmatpush.msra.mxu0 0.0
    %281 = vmatpush.msra.mxu0 0.0
    %282 = vmatpush.msra.mxu0 0.0
    %283 = vmatpush.msra.mxu0 0.0
    %284 = vmatpush.msra.mxu0 0.0
    %285 = vmatpush.msra.mxu0 0.0
    %286 = vmatpush.msra.mxu0 0.0
    %287 = vmatpush.msra.mxu0 0.0
    %288 = vmatpush.msra.mxu0 0.0
    %289 = vmatpush.msra.mxu0 0.0
    %290 = vmatpush.msra.mxu0 %v264
    %291 = vmatmul.f32.gmra.mxu0 %v270
    %v292 = vpop.f32.mrf.mxu0
    %v293 = vadd.f32 0.0, %v292
    %294 = vmatmul.f32.gmra.mxu0 %v273
    %v295 = vpop.f32.mrf.mxu0
    %v296 = vadd.f32 0.0, %v295
    %297 = vdwg.mxu0
    %298 = vmatpush.msra.mxu0 0.0
    %299 = vmatpush.msra.mxu0 0.0
    %300 = vmatpush.msra.mxu0 0.0
    %301 = vmatpush.msra.mxu0 0.0
    %302 = vmatpush.msra.mxu0 0.0
    %303 = vmatpush.msra.mxu0 0.0
    %304 = vmatpush.msra.mxu0 0.0
    %305 = vmatpush.msra.mxu0 0.0
    %306 = vmatpush.msra.mxu0 0.0
    %307 = vmatpush.msra.mxu0 0.0
    %308 = vmatpush.msra.mxu0 0.0
    %309 = vmatpush.msra.mxu0 0.0
    %310 = vmatpush.msra.mxu0 0.0
    %311 = vmatpush.msra.mxu0 0.0
    %312 = vmatpush.msra.mxu0 0.0
    %313 = vmatpush.msra.mxu0 %v265
    %314 = vmatmul.f32.gmra.mxu0 %v270
    %v315 = vpop.f32.mrf.mxu0
    %v316 = vadd.f32 0.0, %v315
    %317 = vmatmul.f32.gmra.mxu0 %v273
    %v318 = vpop.f32.mrf.mxu0
    %v319 = vadd.f32 0.0, %v318
    %320 = vdwg.mxu0
    %v321 = vadd.f32 %v253, %v293
    %v322 = vadd.f32 %v254, %v316
    %v323 = vadd.f32 %v255, %v296
    %v324 = vadd.f32 %v256, %v319
    %s325 = scalar_lea.vmem %s1, 64
    %v326 = vld [vmem:[%s325] sm:$0xff]
    %v327 = vld [vmem:[%s325 + $0x8] sm:$0xff]
    %v329 = vsel %vm82, %v326, 0
    %v332 = vsel %vm82, %v327, 0
    %334 = vmatpush.msra.mxu0 0.0
    %335 = vmatpush.msra.mxu0 0.0
    %336 = vmatpush.msra.mxu0 0.0
    %337 = vmatpush.msra.mxu0 0.0
    %338 = vmatpush.msra.mxu0 0.0
    %339 = vmatpush.msra.mxu0 0.0
    %340 = vmatpush.msra.mxu0 0.0
    %341 = vmatpush.msra.mxu0 0.0
    %342 = vmatpush.msra.mxu0 0.0
    %343 = vmatpush.msra.mxu0 0.0
    %344 = vmatpush.msra.mxu0 0.0
    %345 = vmatpush.msra.mxu0 0.0
    %346 = vmatpush.msra.mxu0 0.0
    %347 = vmatpush.msra.mxu0 0.0
    %348 = vmatpush.msra.mxu0 0.0
    %349 = vmatpush.msra.mxu0 %v42
    %350 = vmatmul.f32.gmra.mxu0 %v329
    %v351 = vpop.f32.mrf.mxu0
    %v352 = vadd.f32 0.0, %v351
    %353 = vmatmul.f32.gmra.mxu0 %v332
    %v354 = vpop.f32.mrf.mxu0
    %v355 = vadd.f32 0.0, %v354
    %356 = vdwg.mxu0
    %357 = vmatpush.msra.mxu0 0.0
    %358 = vmatpush.msra.mxu0 0.0
    %359 = vmatpush.msra.mxu0 0.0
    %360 = vmatpush.msra.mxu0 0.0
    %361 = vmatpush.msra.mxu0 0.0
    %362 = vmatpush.msra.mxu0 0.0
    %363 = vmatpush.msra.mxu0 0.0
    %364 = vmatpush.msra.mxu0 0.0
    %365 = vmatpush.msra.mxu0 0.0
    %366 = vmatpush.msra.mxu0 0.0
    %367 = vmatpush.msra.mxu0 0.0
    %368 = vmatpush.msra.mxu0 0.0
    %369 = vmatpush.msra.mxu0 0.0
    %370 = vmatpush.msra.mxu0 0.0
    %371 = vmatpush.msra.mxu0 0.0
    %372 = vmatpush.msra.mxu0 %v43
    %373 = vmatmul.f32.gmra.mxu0 %v329
    %v374 = vpop.f32.mrf.mxu0
    %v375 = vadd.f32 0.0, %v374
    %376 = vmatmul.f32.gmra.mxu0 %v332
    %v377 = vpop.f32.mrf.mxu0
    %v378 = vadd.f32 0.0, %v377
    %379 = vdwg.mxu0
    %v380 = vadd.f32 %v321, %v352
    %v381 = vadd.f32 %v322, %v375
    %v382 = vadd.f32 %v323, %v355
    %v383 = vadd.f32 %v324, %v378
    %384 = vrot.lane.b32.xlu0 %v42, 127
    %v385 = vpop.permute.xlu0 %384
    %386 = vrot.lane.b32.xlu0 %v43, 127
    %v387 = vpop.permute.xlu0 %386
    %vm388 = vcmp.lt.s32.totalorder %v45, 127
    %v389 = vsel %vm388, %v385, %v387
    %v390 = vsel %vm388, %v387, %v385
    %v391 = vsel %vm55, %v389, 0.0
    %v392 = vsel %vm56, %v390, 0.0
    %s393 = scalar_lea.vmem %s1, 80
    %v394 = vld [vmem:[%s393] sm:$0xff]
    %v395 = vld [vmem:[%s393 + $0x8] sm:$0xff]
    %v397 = vsel %vm82, %v394, 0
    %v400 = vsel %vm82, %v395, 0
    %402 = vmatpush.msra.mxu0 0.0
    %403 = vmatpush.msra.mxu0 0.0
    %404 = vmatpush.msra.mxu0 0.0
    %405 = vmatpush.msra.mxu0 0.0
    %406 = vmatpush.msra.mxu0 0.0
    %407 = vmatpush.msra.mxu0 0.0
    %408 = vmatpush.msra.mxu0 0.0
    %409 = vmatpush.msra.mxu0 0.0
    %410 = vmatpush.msra.mxu0 0.0
    %411 = vmatpush.msra.mxu0 0.0
    %412 = vmatpush.msra.mxu0 0.0
    %413 = vmatpush.msra.mxu0 0.0
    %414 = vmatpush.msra.mxu0 0.0
    %415 = vmatpush.msra.mxu0 0.0
    %416 = vmatpush.msra.mxu0 0.0
    %417 = vmatpush.msra.mxu0 %v391
    %418 = vmatmul.f32.gmra.mxu0 %v397
    %v419 = vpop.f32.mrf.mxu0
    %v420 = vadd.f32 0.0, %v419
    %421 = vmatmul.f32.gmra.mxu0 %v400
    %v422 = vpop.f32.mrf.mxu0
    %v423 = vadd.f32 0.0, %v422
    %424 = vdwg.mxu0
    %425 = vmatpush.msra.mxu0 0.0
    %426 = vmatpush.msra.mxu0 0.0
    %427 = vmatpush.msra.mxu0 0.0
    %428 = vmatpush.msra.mxu0 0.0
    %429 = vmatpush.msra.mxu0 0.0
    %430 = vmatpush.msra.mxu0 0.0
    %431 = vmatpush.msra.mxu0 0.0
    %432 = vmatpush.msra.mxu0 0.0
    %433 = vmatpush.msra.mxu0 0.0
    %434 = vmatpush.msra.mxu0 0.0
    %435 = vmatpush.msra.mxu0 0.0
    %436 = vmatpush.msra.mxu0 0.0
    %437 = vmatpush.msra.mxu0 0.0
    %438 = vmatpush.msra.mxu0 0.0
    %439 = vmatpush.msra.mxu0 0.0
    %440 = vmatpush.msra.mxu0 %v392
    %441 = vmatmul.f32.gmra.mxu0 %v397
    %v442 = vpop.f32.mrf.mxu0
    %v443 = vadd.f32 0.0, %v442
    %444 = vmatmul.f32.gmra.mxu0 %v400
    %v445 = vpop.f32.mrf.mxu0
    %v446 = vadd.f32 0.0, %v445
    %447 = vdwg.mxu0
    %v448 = vadd.f32 %v380, %v420
    %v449 = vadd.f32 %v381, %v443
    %v450 = vadd.f32 %v382, %v423
    %v451 = vadd.f32 %v383, %v446
    %452 = vrot.lane.b32.xlu0 %v42, 113
    %v453 = vpop.permute.xlu0 %452
    %454 = vrot.lane.b32.xlu0 %v43, 113
    %v455 = vpop.permute.xlu0 %454
    %vm456 = vcmp.lt.s32.totalorder %v45, 113
    %v457 = vsel %vm456, %v453, %v455
    %v458 = vsel %vm456, %v455, %v453
    %vm459 = vmand %vm51, %vm53
    %vm460 = vmand %vm52, %vm54
    %v461 = vsel %vm459, %v457, 0.0
    %v462 = vsel %vm460, %v458, 0.0
    %s463 = scalar_lea.vmem %s1, 96
    %v464 = vld [vmem:[%s463] sm:$0xff]
    %v465 = vld [vmem:[%s463 + $0x8] sm:$0xff]
    %v467 = vsel %vm82, %v464, 0
    %v470 = vsel %vm82, %v465, 0
    %472 = vmatpush.msra.mxu0 0.0
    %473 = vmatpush.msra.mxu0 0.0
    %474 = vmatpush.msra.mxu0 0.0
    %475 = vmatpush.msra.mxu0 0.0
    %476 = vmatpush.msra.mxu0 0.0
    %477 = vmatpush.msra.mxu0 0.0
    %478 = vmatpush.msra.mxu0 0.0
    %479 = vmatpush.msra.mxu0 0.0
    %480 = vmatpush.msra.mxu0 0.0
    %481 = vmatpush.msra.mxu0 0.0
    %482 = vmatpush.msra.mxu0 0.0
    %483 = vmatpush.msra.mxu0 0.0
    %484 = vmatpush.msra.mxu0 0.0
    %485 = vmatpush.msra.mxu0 0.0
    %486 = vmatpush.msra.mxu0 0.0
    %487 = vmatpush.msra.mxu0 %v461
    %488 = vmatmul.f32.gmra.mxu0 %v467
    %v489 = vpop.f32.mrf.mxu0
    %v490 = vadd.f32 0.0, %v489
    %491 = vmatmul.f32.gmra.mxu0 %v470
    %v492 = vpop.f32.mrf.mxu0
    %v493 = vadd.f32 0.0, %v492
    %494 = vdwg.mxu0
    %495 = vmatpush.msra.mxu0 0.0
    %496 = vmatpush.msra.mxu0 0.0
    %497 = vmatpush.msra.mxu0 0.0
    %498 = vmatpush.msra.mxu0 0.0
    %499 = vmatpush.msra.mxu0 0.0
    %500 = vmatpush.msra.mxu0 0.0
    %501 = vmatpush.msra.mxu0 0.0
    %502 = vmatpush.msra.mxu0 0.0
    %503 = vmatpush.msra.mxu0 0.0
    %504 = vmatpush.msra.mxu0 0.0
    %505 = vmatpush.msra.mxu0 0.0
    %506 = vmatpush.msra.mxu0 0.0
    %507 = vmatpush.msra.mxu0 0.0
    %508 = vmatpush.msra.mxu0 0.0
    %509 = vmatpush.msra.mxu0 0.0
    %510 = vmatpush.msra.mxu0 %v462
    %511 = vmatmul.f32.gmra.mxu0 %v467
    %v512 = vpop.f32.mrf.mxu0
    %v513 = vadd.f32 0.0, %v512
    %514 = vmatmul.f32.gmra.mxu0 %v470
    %v515 = vpop.f32.mrf.mxu0
    %v516 = vadd.f32 0.0, %v515
    %517 = vdwg.mxu0
    %v518 = vadd.f32 %v448, %v490
    %v519 = vadd.f32 %v449, %v513
    %v520 = vadd.f32 %v450, %v493
    %v521 = vadd.f32 %v451, %v516
    %522 = vrot.lane.b32.xlu0 %v42, 112
    %v523 = vpop.permute.xlu0 %522
    %524 = vrot.lane.b32.xlu0 %v43, 112
    %v525 = vpop.permute.xlu0 %524
    %vm526 = vcmp.lt.s32.totalorder %v45, 112
    %v527 = vsel %vm526, %v523, %v525
    %v528 = vsel %vm526, %v525, %v523
    %v529 = vsel %vm51, %v527, 0.0
    %v530 = vsel %vm52, %v528, 0.0
    %s531 = scalar_lea.vmem %s1, 112
    %v532 = vld [vmem:[%s531] sm:$0xff]
    %v533 = vld [vmem:[%s531 + $0x8] sm:$0xff]
    %v535 = vsel %vm82, %v532, 0
    %v538 = vsel %vm82, %v533, 0
    %540 = vmatpush.msra.mxu0 0.0
    %541 = vmatpush.msra.mxu0 0.0
    %542 = vmatpush.msra.mxu0 0.0
    %543 = vmatpush.msra.mxu0 0.0
    %544 = vmatpush.msra.mxu0 0.0
    %545 = vmatpush.msra.mxu0 0.0
    %546 = vmatpush.msra.mxu0 0.0
    %547 = vmatpush.msra.mxu0 0.0
    %548 = vmatpush.msra.mxu0 0.0
    %549 = vmatpush.msra.mxu0 0.0
    %550 = vmatpush.msra.mxu0 0.0
    %551 = vmatpush.msra.mxu0 0.0
    %552 = vmatpush.msra.mxu0 0.0
    %553 = vmatpush.msra.mxu0 0.0
    %554 = vmatpush.msra.mxu0 0.0
    %555 = vmatpush.msra.mxu0 %v529
    %556 = vmatmul.f32.gmra.mxu0 %v535
    %v557 = vpop.f32.mrf.mxu0
    %v558 = vadd.f32 0.0, %v557
    %559 = vmatmul.f32.gmra.mxu0 %v538
    %v560 = vpop.f32.mrf.mxu0
    %v561 = vadd.f32 0.0, %v560
    %562 = vdwg.mxu0
    %563 = vmatpush.msra.mxu0 0.0
    %564 = vmatpush.msra.mxu0 0.0
    %565 = vmatpush.msra.mxu0 0.0
    %566 = vmatpush.msra.mxu0 0.0
    %567 = vmatpush.msra.mxu0 0.0
    %568 = vmatpush.msra.mxu0 0.0
    %569 = vmatpush.msra.mxu0 0.0
    %570 = vmatpush.msra.mxu0 0.0
    %571 = vmatpush.msra.mxu0 0.0
    %572 = vmatpush.msra.mxu0 0.0
    %573 = vmatpush.msra.mxu0 0.0
    %574 = vmatpush.msra.mxu0 0.0
    %575 = vmatpush.msra.mxu0 0.0
    %576 = vmatpush.msra.mxu0 0.0
    %577 = vmatpush.msra.mxu0 0.0
    %578 = vmatpush.msra.mxu0 %v530
    %579 = vmatmul.f32.gmra.mxu0 %v535
    %v580 = vpop.f32.mrf.mxu0
    %v581 = vadd.f32 0.0, %v580
    %582 = vmatmul.f32.gmra.mxu0 %v538
    %v583 = vpop.f32.mrf.mxu0
    %v584 = vadd.f32 0.0, %v583
    %585 = vdwg.mxu0
    %v586 = vadd.f32 %v518, %v558
    %v587 = vadd.f32 %v519, %v581
    %v588 = vadd.f32 %v520, %v561
    %v589 = vadd.f32 %v521, %v584
    %590 = vrot.lane.b32.xlu0 %v42, 111
    %v591 = vpop.permute.xlu0 %590
    %592 = vrot.lane.b32.xlu0 %v43, 111
    %v593 = vpop.permute.xlu0 %592
    %vm594 = vcmp.lt.s32.totalorder %v45, 111
    %v595 = vsel %vm594, %v591, %v593
    %v596 = vsel %vm594, %v593, %v591
    %vm597 = vmand %vm51, %vm55
    %vm598 = vmand %vm52, %vm56
    %v599 = vsel %vm597, %v595, 0.0
    %v600 = vsel %vm598, %v596, 0.0
    %s601 = scalar_lea.vmem %s1, 128
    %v602 = vld [vmem:[%s601] sm:$0xff]
    %v603 = vld [vmem:[%s601 + $0x8] sm:$0xff]
    %v605 = vsel %vm82, %v602, 0
    %v608 = vsel %vm82, %v603, 0
    %610 = vmatpush.msra.mxu0 0.0
    %611 = vmatpush.msra.mxu0 0.0
    %612 = vmatpush.msra.mxu0 0.0
    %613 = vmatpush.msra.mxu0 0.0
    %614 = vmatpush.msra.mxu0 0.0
    %615 = vmatpush.msra.mxu0 0.0
    %616 = vmatpush.msra.mxu0 0.0
    %617 = vmatpush.msra.mxu0 0.0
    %618 = vmatpush.msra.mxu0 0.0
    %619 = vmatpush.msra.mxu0 0.0
    %620 = vmatpush.msra.mxu0 0.0
    %621 = vmatpush.msra.mxu0 0.0
    %622 = vmatpush.msra.mxu0 0.0
    %623 = vmatpush.msra.mxu0 0.0
    %624 = vmatpush.msra.mxu0 0.0
    %625 = vmatpush.msra.mxu0 %v599
    %626 = vmatmul.f32.gmra.mxu0 %v605
    %v627 = vpop.f32.mrf.mxu0
    %v628 = vadd.f32 0.0, %v627
    %629 = vmatmul.f32.gmra.mxu0 %v608
    %v630 = vpop.f32.mrf.mxu0
    %v631 = vadd.f32 0.0, %v630
    %632 = vdwg.mxu0
    %633 = vmatpush.msra.mxu0 0.0
    %634 = vmatpush.msra.mxu0 0.0
    %635 = vmatpush.msra.mxu0 0.0
    %636 = vmatpush.msra.mxu0 0.0
    %637 = vmatpush.msra.mxu0 0.0
    %638 = vmatpush.msra.mxu0 0.0
    %639 = vmatpush.msra.mxu0 0.0
    %640 = vmatpush.msra.mxu0 0.0
    %641 = vmatpush.msra.mxu0 0.0
    %642 = vmatpush.msra.mxu0 0.0
    %643 = vmatpush.msra.mxu0 0.0
    %644 = vmatpush.msra.mxu0 0.0
    %645 = vmatpush.msra.mxu0 0.0
    %646 = vmatpush.msra.mxu0 0.0
    %647 = vmatpush.msra.mxu0 0.0
    %648 = vmatpush.msra.mxu0 %v600
    %649 = vmatmul.f32.gmra.mxu0 %v605
    %v650 = vpop.f32.mrf.mxu0
    %v651 = vadd.f32 0.0, %v650
    %652 = vmatmul.f32.gmra.mxu0 %v608
    %v653 = vpop.f32.mrf.mxu0
    %v654 = vadd.f32 0.0, %v653
    %655 = vdwg.mxu0
    %v656 = vadd.f32 %v586, %v628
    %v657 = vadd.f32 %v587, %v651
    %v658 = vadd.f32 %v588, %v631
    %v659 = vadd.f32 %v589, %v654
    %v660 = vld [vmem:[%s5] sm:$0xff]
    %v661 = vld [vmem:[%s5 + $0x8] sm:$0xff]
    %663 = vset.pattern.permute.xlu0 0
    %664 = vperm.xlu0 %663, %v660
    %v665 = vpop.permute.xlu0 %664
    %668 = vset.pattern.permute.xlu0 0
    %669 = vperm.xlu0 %668, %v661
    %v670 = vpop.permute.xlu0 %669
    %v672 = vadd.f32 %v656, %v665
    %v673 = vadd.f32 %v657, %v665
    %v674 = vadd.f32 %v658, %v670
    %v675 = vadd.f32 %v659, %v670
    %v676 = vmax.f32 %v672, 0.0
    %v677 = vmax.f32 %v673, 0.0
    %v678 = vmax.f32 %v674, 0.0
    %v679 = vmax.f32 %v675, 0.0
    %v680 = vld [vmem:[%s4] sm:$0xf]
    %vm681 = vcmask 130048
    %v683 = vsel %vm681, %v680, 0
    %685 = vmatpush.msra.mxu0 0.0
    %686 = vmatpush.msra.mxu0 0.0
    %687 = vmatpush.msra.mxu0 0.0
    %688 = vmatpush.msra.mxu0 0.0
    %689 = vmatpush.msra.mxu0 0.0
    %690 = vmatpush.msra.mxu0 0.0
    %691 = vmatpush.msra.mxu0 0.0
    %692 = vmatpush.msra.mxu0 0.0
    %693 = vmatpush.msra.mxu0 0.0
    %694 = vmatpush.msra.mxu0 0.0
    %695 = vmatpush.msra.mxu0 0.0
    %696 = vmatpush.msra.mxu0 0.0
    %697 = vmatpush.msra.mxu0 0.0
    %698 = vmatpush.msra.mxu0 0.0
    %699 = vmatpush.msra.mxu0 %v678
    %700 = vmatpush.msra.mxu0 %v676
    %701 = vmatmul.f32.gmra.mxu0 %v683
    %v702 = vpop.f32.mrf.mxu0
    %v703 = vadd.f32 0.0, %v702
    %704 = vdwg.mxu0
    %705 = vmatpush.msra.mxu0 0.0
    %706 = vmatpush.msra.mxu0 0.0
    %707 = vmatpush.msra.mxu0 0.0
    %708 = vmatpush.msra.mxu0 0.0
    %709 = vmatpush.msra.mxu0 0.0
    %710 = vmatpush.msra.mxu0 0.0
    %711 = vmatpush.msra.mxu0 0.0
    %712 = vmatpush.msra.mxu0 0.0
    %713 = vmatpush.msra.mxu0 0.0
    %714 = vmatpush.msra.mxu0 0.0
    %715 = vmatpush.msra.mxu0 0.0
    %716 = vmatpush.msra.mxu0 0.0
    %717 = vmatpush.msra.mxu0 0.0
    %718 = vmatpush.msra.mxu0 0.0
    %719 = vmatpush.msra.mxu0 %v679
    %720 = vmatpush.msra.mxu0 %v677
    %721 = vmatmul.f32.gmra.mxu0 %v683
    %v722 = vpop.f32.mrf.mxu0
    %v723 = vadd.f32 0.0, %v722
    %724 = vdwg.mxu0
    %v727 = vrot.slane %v723, 4
    %vm728 = vcmask 1043456
    %v729 = vsel %vm728, %v703, %v727
    %731 = vst [vmem:[#allocation2] sm:$0xff] %v729
    // Predicated region
    $region26: #{tpu_custom_call.1} parent=1 // pred_check
      _
    $region27: #{tpu_custom_call.1} parent=1 // pred_check_branch
      %733 = sbr.rel (0) target = $region29
    $region28: #{tpu_custom_call.1} parent=1 // pred_region
      %735 = vsyncadd [#allocation3], 0
      %s737 = sshll.u32 [#allocation2], 4
      %s738 = int_to_ptr.vmem [resolvable:$true] %s737
      %s739 = sshll.u32 %s6, 4
      %s740 = int_to_ptr.hbm [resolvable:$true] %s739
      %742 = dma.vmem_to_hbm [thread:$0]  %s738, 128, %s740, [#allocation3]
    $region29: #{tpu_custom_call.1} parent=1 // pred_fallthru
      _
    // Predicated region
    $region30: #{tpu_custom_call.1} parent=1 // pred_check
      _
    $region31: #{tpu_custom_call.1} parent=1 // pred_check_branch
      %744 = sbr.rel (0) target = $region33
    $region32: #{tpu_custom_call.1} parent=1 // pred_region
      %746 = dma.done [#allocation3], 128
    $region33: #{tpu_custom_call.1} parent=1 // pred_fallthru
      _
    %747 = vsyncpa [#allocation3], 1

</llo_original>
